<compile_context>
chip_gen: v6e
topology: v6e:2x2x1
jax: 0.10.0
libtpu: 0.0.40
codegen_flags: <defaults>
</compile_context>

<pallas_src>
import jax
import jax.numpy as jnp
from jax.experimental import pallas as pl
from jax.experimental.pallas import tpu as pltpu


def _copy_kernel(x_ref, o_ref):
    # Placeholder forward: no layers defined, so pass the tile through.
    o_ref[...] = x_ref[...]


_LANE = 128
_TARGET_BLOCK_BYTES = 4 * 1024 * 1024   # ~4 MiB per buffer target
_VMEM_LIMIT_BYTES = 48 * 1024 * 1024    # safe on v5e/v6e (128 MiB) and v7x (64 MiB)


def _min_sublane(itemsize: int) -> int:
    # Minimum second-to-last block dim per dtype width (f32 / bf16 / int8).
    return {4: 8, 2: 16, 1: 32}.get(itemsize, 8)


def _round_up(x: int, m: int) -> int:
    return ((x + m - 1) // m) * m


def hifigan_forward(mel_spectrogram: jax.Array) -> jax.Array:
    """Pallas analogue of HiFiGAN.forward (placeholder -> identity pass-through)."""
    orig_shape = mel_spectrogram.shape
    dtype = mel_spectrogram.dtype
    n = mel_spectrogram.size
    if n == 0:
        return mel_spectrogram

    itemsize = jnp.dtype(dtype).itemsize
    msl = _min_sublane(itemsize)

    # Lane-dense flattening when the element count is 128-divisible; otherwise
    # keep the native last dim at full extent (a full-extent last dim is a legal
    # block regardless of 128-alignment) and only tile the flattened rows.
    cols = None
    for c in (4096, 2048, 1024, 512, 256, _LANE):
        if n % c == 0:
            cols = c
            break
    if cols is None:
        # TODO(synk): if a single non-128-alignable row ever exceeds VMEM this
        # path would need an extra lane-dim split; mel inputs never get there.
        cols = orig_shape[-1] if mel_spectrogram.ndim >= 1 else 1
        cols = max(cols, 1)
    rows = n // cols

    # Wrapper-side reshape: present a lane-dense 2D slab to the kernel.
    x2d = mel_spectrogram.reshape(rows, cols)

    # Row tiling: ~4 MiB blocks, multiple of the dtype's min sublane tile,
    # cdiv grid with a ragged (masked) last block.
    row_bytes = cols * itemsize
    block_rows = max(msl, _TARGET_BLOCK_BYTES // row_bytes)
    block_rows = (block_rows // msl) * msl
    if block_rows >= rows:
        # Whole array fits in a single target-size block: split in two when we
        # can, so v7x's two TensorCores both get a block; else full extent.
        if rows >= 2 * msl:
            block_rows = _round_up(pl.cdiv(rows, 2), msl)
        else:
            block_rows = rows
    grid_rows = pl.cdiv(rows, block_rows)

    out2d = pl.pallas_call(
        _copy_kernel,
        out_shape=jax.ShapeDtypeStruct((rows, cols), dtype),
        grid=(grid_rows,),
        in_specs=[pl.BlockSpec((block_rows, cols), lambda i: (i, 0))],
        out_specs=pl.BlockSpec((block_rows, cols), lambda i: (i, 0)),
        input_output_aliases={0: 0},
        cost_estimate=pl.CostEstimate(
            flops=0, transcendentals=0, bytes_accessed=2 * n * itemsize
        ),
        compiler_params=pltpu.CompilerParams(
            dimension_semantics=("parallel",),   # shard the copy across both TCs on v7x
            vmem_limit_bytes=_VMEM_LIMIT_BYTES,
        ),
    )(x2d)
    return out2d.reshape(orig_shape)


if __name__ == "__main__":
    key = jax.random.PRNGKey(0)

    # Small mel-spectrogram: (batch=2, n_mels=8, frames=16), NCT layout.
    mel = jax.random.normal(key, (2, 8, 16), dtype=jnp.float32)
    out = hifigan_forward(mel)
    jax.block_until_ready(out)
    assert out.shape == mel.shape and out.dtype == mel.dtype
    assert bool(jnp.allclose(out, mel))

    # Multi-block tiled path (grid = 2, both blocks full).
    mel_big = jax.random.normal(jax.random.PRNGKey(0), (2, 80, 4096), dtype=jnp.float32)
    out_big = hifigan_forward(mel_big)
    jax.block_until_ready(out_big)
    assert out_big.shape == mel_big.shape
    assert bool(jnp.allclose(out_big, mel_big))

    # Ragged-last-block path (rows=400, block_rows=256 -> masked edge block).
    mel_ragged = jax.random.normal(jax.random.PRNGKey(0), (5, 80, 4096), dtype=jnp.float32)
    out_ragged = hifigan_forward(mel_ragged)
    jax.block_until_ready(out_ragged)
    assert out_ragged.shape == mel_ragged.shape
    assert bool(jnp.allclose(out_ragged, mel_ragged))

    print("KERNEL_OK")
</pallas_src>

<mosaic_0001>
module attributes {stable_mosaic.version = 11 : i64} {
  func.func @_copy_kernel(%arg0: i32, %arg1: memref<1x256xf32, #tpu.memory_space<vmem>>, %arg2: memref<1x256xf32, #tpu.memory_space<vmem>>) attributes {dimension_semantics = [#tpu.dimension_semantics<parallel>], iteration_bounds = array<i64: 1>, scalar_prefetch = 0 : i64, scratch_operands = 0 : i64, tpu.core_type = #tpu.core_type<tc>, window_params = [{transform_indices = @transform_0, window_bounds = array<i64: 1, 256>}, {transform_indices = @transform_1, window_bounds = array<i64: 1, 256>}]} {
    %c0 = arith.constant 0 : index
    %c0_0 = arith.constant 0 : index
    %0 = vector.load %arg1[%c0, %c0_0] : memref<1x256xf32, #tpu.memory_space<vmem>>, vector<1x256xf32>
    %c0_1 = arith.constant 0 : index
    %c0_2 = arith.constant 0 : index
    %1 = vector.load %arg2[%c0_1, %c0_2] : memref<1x256xf32, #tpu.memory_space<vmem>>, vector<1x256xf32>
    tpu.vector_store %arg2[%c0_1, %c0_2], %0 {strides = array<i32>} : memref<1x256xf32, #tpu.memory_space<vmem>>, vector<1x256xf32>,
    return
  }
  func.func @transform_0(%arg0: i32) -> (i32, i32) {
    %c0_i32 = arith.constant 0 : i32
    %c0_i32_0 = arith.constant 0 : i32
    return %arg0, %c0_i32 : i32, i32
  }
  func.func @transform_1(%arg0: i32) -> (i32, i32) {
    %c0_i32 = arith.constant 0 : i32
    %c0_i32_0 = arith.constant 0 : i32
    return %arg0, %c0_i32 : i32, i32
  }
}

</mosaic_0001>

<llo_original>
// kernel: tpu_custom_call.1
$region0: #{tpu_custom_call.1}
  #allocation0 [shape = 'u32[]', space=smem, size = 0x4, offset = 0x4, fixed_abs, tag = 'smem constant byte address 0x4 - core index']
  #allocation1 [shape = 'u32[144,128]{1,0:T(1,128)}', space=vmem, size = 0x12000, scoped, tag = 'internal scratch']
  %s0 = inlined_call_operand.hbm [shape: f32[1,256], index: 0, kind: input, shape index: {}, may-alias: {0,1}]
  %s1 = inlined_call_operand.hbm [shape: f32[1,256], index: 1, kind: output, shape index: {}, may-alias: {0,1}]
  %s2 = sld [smem:[#allocation0]]
  $region18: #{tpu_custom_call.1} parent=0
    _
  %s4 = ssub.s32 1, %s2
  %s5 = scalar_select 0, %s4, %s2
  $region1: #{tpu_custom_call.1} parent=0
    #allocation2 [shape = 'u8[1024]{0}', space=vmem, size = 0x400, scoped, tag = 'input window, operand 0, single buffered']
    #allocation3 [shape = 's32[1]{0}', space=sflag, size = 0x4, scoped, tag = 'scoped memory for tpu_custom_call.1']
    #allocation4 [shape = 's32[1]{0}', space=sflag, size = 0x4, scoped, tag = 'scoped memory for tpu_custom_call.1']
    #allocation5 [shape = 'u8[1024]{0}', space=vmem, size = 0x400, scoped, tag = 'output window, operand 0, single buffered']
    %6 = vsyncpa [#allocation3], 0
    %7 = vsyncpa [#allocation4], 0
    // Predicated region
    $region2: #{tpu_custom_call.1} parent=1 // pred_check
      _
    $region3: #{tpu_custom_call.1} parent=1 // pred_check_branch
      %9 = sbr.rel (0) target = $region5
    $region4: #{tpu_custom_call.1} parent=1 // pred_region
      %s11 = ssub.s32 32, 32
      %12 = vsyncadd [#allocation3], %s11
      %s14 = sshll.u32 [#allocation2], 4
      %s15 = int_to_ptr.vmem [resolvable:$true] %s14
      %17 = dma.hbm_to_vmem [thread:$0]  %s0, 32, %s15, [#allocation3]
    $region5: #{tpu_custom_call.1} parent=1 // pred_fallthru
      _
    // Predicated region
    $region6: #{tpu_custom_call.1} parent=1 // pred_check
      _
    $region7: #{tpu_custom_call.1} parent=1 // pred_check_branch
      %19 = sbr.rel (0) target = $region9
    $region8: #{tpu_custom_call.1} parent=1 // pred_region
      %20 = dma.done [#allocation3], 32
    $region9: #{tpu_custom_call.1} parent=1 // pred_fallthru
      _
    %v21 = vld [vmem:[#allocation2] sm:$0x3]
    %v22 = vlaneseq
    %vm23 = vcmp.ge.s32.totalorder %v22, 0
    %vm24 = vcmp.lt.s32.totalorder %v22, 256
    %vm25 = vmand %vm23, %vm24
    %26 = vst.msk [vmem:[#allocation5] sm:$0x3] %vm25, %v21
    // Predicated region
    $region10: #{tpu_custom_call.1} parent=1 // pred_check
      _
    $region11: #{tpu_custom_call.1} parent=1 // pred_check_branch
      %28 = sbr.rel (0) target = $region13
    $region12: #{tpu_custom_call.1} parent=1 // pred_region
      %s30 = ssub.s32 32, 32
      %31 = vsyncadd [#allocation4], %s30
      %s33 = sshll.u32 [#allocation5], 4
      %s34 = int_to_ptr.vmem [resolvable:$true] %s33
      %36 = dma.vmem_to_hbm [thread:$0]  %s34, 32, %s1, [#allocation4]
    $region13: #{tpu_custom_call.1} parent=1 // pred_fallthru
      _
    // Predicated region
    $region14: #{tpu_custom_call.1} parent=1 // pred_check
      _
    $region15: #{tpu_custom_call.1} parent=1 // pred_check_branch
      %38 = sbr.rel (0) target = $region17
    $region16: #{tpu_custom_call.1} parent=1 // pred_region
      %39 = dma.done [#allocation4], 32
    $region17: #{tpu_custom_call.1} parent=1 // pred_fallthru
      _
    %40 = vsyncpa [#allocation3], 1
    %41 = vsyncpa [#allocation4], 1

</llo_original>
